<compile_context>
chip_gen: v7x
topology: tpu7x:2x2x1
jax: 0.10.0
libtpu: 0.0.40
codegen_flags: <defaults>
</compile_context>

<pallas_src>
import jax
import jax.numpy as jnp
from jax.experimental import pallas as pl
from jax.experimental.pallas import tpu as pltpu

# Module-level hyperparameters (the PyTorch module pulls these from globals).
D_MODEL = 32
VOCAB_SIZE = 64
MAX_SEQ_LEN = 8
FF_DROPOUT = 0.1


def _input_embed_kernel(ids_ref, emb_ref, pe_ref, out_ref):
    """Single invocation (no grid): handles the whole batch at once.

    ids_ref : (B*T, 1) int32   -- flattened token ids (batch folded into M)
    emb_ref : (V, D)   float32 -- full embedding table, VMEM resident
    pe_ref  : (T, D)   float32 -- sinusoidal positional encodings
    out_ref : (B*T, D) float32 -- token_embed + pos_encoding
    """
    ids = ids_ref[...]                      # (N, 1) int32
    N = out_ref.shape[0]
    V = emb_ref.shape[0]
    T = pe_ref.shape[0]

    # Embedding gather as a single one-hot @ table MXU pass for the whole
    # batch (B folded into M). Exact in f32 since the one-hot matrix is {0,1}.
    iota_v = jax.lax.broadcasted_iota(jnp.int32, (N, V), 1)      # (N, V)
    onehot = (iota_v == ids).astype(jnp.float32)                 # (N, V)
    tok = jnp.dot(onehot, emb_ref[...],
                  preferred_element_type=jnp.float32)            # (N, D)

    # Positional encodings repeated across the batch: static sublane concat
    # (XLU path, off the critical VPU/MXU slots).
    pe_full = jnp.tile(pe_ref[...], (N // T, 1))                 # (N, D)

    out_ref[...] = (tok + pe_full).astype(out_ref.dtype)
    # TODO(synk): training-mode dropout (stateful RNG mask) not implemented;
    # eval-mode dropout is the identity.


def make_positional_encoding(seq_len: int, d_model: int) -> jnp.ndarray:
    """Exact reproduction of the PyTorch PE construction (incl. its 10000**(+2i/d))."""
    positions = jnp.arange(seq_len, dtype=jnp.float32)[:, None]          # (S, 1)
    even_odd_i = jnp.arange(0, d_model, 2, dtype=jnp.float32)            # (D/2,)
    div_freqs_term = jnp.power(10000.0, even_odd_i / d_model)            # (D/2,)
    pe = jnp.zeros((seq_len, d_model), dtype=jnp.float32)
    pe = pe.at[:, 0::2].set(jnp.sin(positions * div_freqs_term))
    pe = pe.at[:, 1::2].set(jnp.cos(positions * div_freqs_term))
    return pe                                                            # (S, D)


def input_embeddings(token_ids: jnp.ndarray,
                     emb_table: jnp.ndarray,
                     pos_enc: jnp.ndarray) -> jnp.ndarray:
    """token_ids: (B, T) int32; emb_table: (V, D) f32; pos_enc: (S, D) f32, S >= T."""
    B, T = token_ids.shape
    V, D = emb_table.shape
    pe = pos_enc[:T, :]                                    # PE sliced to seq length
    ids2 = token_ids.astype(jnp.int32).reshape(B * T, 1)   # fold batch into M axis

    out_flat = pl.pallas_call(
        _input_embed_kernel,
        out_shape=jax.ShapeDtypeStruct((B * T, D), jnp.float32),
        in_specs=[
            pl.BlockSpec(memory_space=pltpu.MemorySpace.VMEM),   # ids       (B*T, 1)
            pl.BlockSpec(memory_space=pltpu.MemorySpace.VMEM),   # emb table (V, D)
            pl.BlockSpec(memory_space=pltpu.MemorySpace.VMEM),   # pos enc   (T, D)
        ],
        out_specs=pl.BlockSpec(memory_space=pltpu.MemorySpace.VMEM),
    )(ids2, emb_table, pe)

    # Splitting the leading axis is a free metadata reshape in XLA.
    return out_flat.reshape(B, T, D)


def _reference(token_ids, emb_table, pos_enc):
    tok = jnp.take(emb_table, token_ids, axis=0)           # (B, T, D)
    return tok + pos_enc[None, :token_ids.shape[1], :]


if __name__ == "__main__":
    key = jax.random.PRNGKey(0)
    k_emb, k_ids = jax.random.split(key)

    # Deterministic parameter init (nn.Embedding default: N(0, 1)).
    emb_table = jax.random.normal(k_emb, (VOCAB_SIZE, D_MODEL), dtype=jnp.float32)
    pos_enc = make_positional_encoding(MAX_SEQ_LEN, D_MODEL)

    # Small example input: batch=2, seq_len=8 token ids.
    B, T = 2, MAX_SEQ_LEN
    token_ids = jax.random.randint(k_ids, (B, T), 0, VOCAB_SIZE, dtype=jnp.int32)

    out = input_embeddings(token_ids, emb_table, pos_enc)
    out = jax.block_until_ready(out)

    ref = _reference(token_ids, emb_table, pos_enc)
    assert out.shape == (B, T, D_MODEL), out.shape
    assert jnp.allclose(out, ref, atol=1e-5, rtol=1e-5), "mismatch vs JAX reference"

    print("KERNEL_OK")
</pallas_src>

<mosaic_0001>
module attributes {stable_mosaic.version = 11 : i64} {
  func.func @_input_embed_kernel(%arg0: memref<16x1xi32, #tpu.memory_space<vmem>>, %arg1: memref<64x32xf32, #tpu.memory_space<vmem>>, %arg2: memref<8x32xf32, #tpu.memory_space<vmem>>, %arg3: memref<16x32xf32, #tpu.memory_space<vmem>>) attributes {dimension_semantics = [], scalar_prefetch = 0 : i64, scratch_operands = 0 : i64, tpu.core_type = #tpu.core_type<tc>} {
    %c0 = arith.constant 0 : index
    %c0_0 = arith.constant 0 : index
    %0 = vector.load %arg0[%c0, %c0_0] : memref<16x1xi32, #tpu.memory_space<vmem>>, vector<16x1xi32>
    %1 = tpu.iota {dimensions = array<i32: 1>} : vector<16x64xi32>
    %2 = vector.broadcast %0 : vector<16x1xi32> to vector<16x64xi32>
    %3 = arith.cmpi eq, %1, %2 : vector<16x64xi32>
    %4 = arith.extui %3 : vector<16x64xi1> to vector<16x64xi32>
    %5 = arith.sitofp %4 : vector<16x64xi32> to vector<16x64xf32>
    %c0_1 = arith.constant 0 : index
    %c0_2 = arith.constant 0 : index
    %6 = vector.load %arg1[%c0_1, %c0_2] : memref<64x32xf32, #tpu.memory_space<vmem>>, vector<64x32xf32>
    %cst = arith.constant dense<0.000000e+00> : vector<16x32xf32>
    %7 = tpu.matmul %5, %6, %cst {dimension_numbers = #tpu.dot_dimension_numbers<[1], [0], [0], [1], [0, 0, 1, 1], [], []>} : vector<16x64xf32>, vector<64x32xf32>, vector<16x32xf32> -> vector<16x32xf32>
    %c0_3 = arith.constant 0 : index
    %c0_4 = arith.constant 0 : index
    %8 = vector.load %arg2[%c0_3, %c0_4] : memref<8x32xf32, #tpu.memory_space<vmem>>, vector<8x32xf32>
    %9 = tpu.concatenate %8, %8 in 0 : vector<8x32xf32>, vector<8x32xf32> -> vector<16x32xf32>
    %10 = arith.addf %7, %9 : vector<16x32xf32>
    %c0_5 = arith.constant 0 : index
    %c0_6 = arith.constant 0 : index
    %11 = vector.load %arg3[%c0_5, %c0_6] : memref<16x32xf32, #tpu.memory_space<vmem>>, vector<16x32xf32>
    tpu.vector_store %arg3[%c0_5, %c0_6], %10 {strides = array<i32>} : memref<16x32xf32, #tpu.memory_space<vmem>>, vector<16x32xf32>,
    return
  }
}

</mosaic_0001>

<llo_original>
// kernel: tpu_custom_call.1
$region0: #{tpu_custom_call.1}
  #allocation0 [shape = 'u32[]', space=smem, size = 0x4, offset = 0x4, fixed_abs, tag = 'smem constant byte address 0x4 - core index']
  #allocation1 [shape = 'u32[144,128]{1,0:T(1,128)}', space=vmem, size = 0x12000, scoped, tag = 'internal scratch']
  %s0 = inlined_call_operand.vmem [shape: s32[16,1], index: 0, kind: input, shape index: {}]
  %s1 = inlined_call_operand.vmem [shape: f32[64,32], index: 1, kind: input, shape index: {}]
  %s2 = inlined_call_operand.vmem [shape: f32[8,32], index: 2, kind: input, shape index: {}]
  %s3 = inlined_call_operand.hbm [shape: f32[16,32], index: 3, kind: output, shape index: {}]
  %s4 = sld [smem:[#allocation0]]
  $region22: #{tpu_custom_call.1} parent=0
    _
  %s6 = ssub.s32 1, %s4
  %s7 = scalar_select 0, %s6, %s4
  $region1: #{tpu_custom_call.1} parent=0
    #allocation2 [shape = 'u8[8192]{0}', space=vmem, size = 0x2000, scoped, tag = 'output window, operand 0, single buffered']
    #allocation3 [shape = 's32[1]{0}', space=sflag, size = 0x4, scoped, tag = 'scoped memory for tpu_custom_call.1']
    %8 = vsyncpa [#allocation3], 0
    // Predicated region
    $region2: #{tpu_custom_call.1} parent=1 // pred_check
      _
    $region3: #{tpu_custom_call.1} parent=1 // pred_check_branch
      %10 = sbr.rel (0) target = $region5
    $region4: #{tpu_custom_call.1} parent=1 // pred_region
      _
    $region5: #{tpu_custom_call.1} parent=1 // pred_fallthru
      _
    // Predicated region
    $region6: #{tpu_custom_call.1} parent=1 // pred_check
      _
    $region7: #{tpu_custom_call.1} parent=1 // pred_check_branch
      %12 = sbr.rel (0) target = $region9
    $region8: #{tpu_custom_call.1} parent=1 // pred_region
      _
    $region9: #{tpu_custom_call.1} parent=1 // pred_fallthru
      _
    // Predicated region
    $region10: #{tpu_custom_call.1} parent=1 // pred_check
      _
    $region11: #{tpu_custom_call.1} parent=1 // pred_check_branch
      %14 = sbr.rel (0) target = $region13
    $region12: #{tpu_custom_call.1} parent=1 // pred_region
      _
    $region13: #{tpu_custom_call.1} parent=1 // pred_fallthru
      _
    %v15 = vld [vmem:[%s0] sm:$0xff]
    %v16 = vld [vmem:[%s0 + $0x8] sm:$0xff]
    %v17 = vlaneseq
    %v18 = vand.u32 %v17, 127
    %19 = vset.pattern.permute.xlu0 0
    %20 = vperm.xlu0 %19, %v15
    %v21 = vpop.permute.xlu0 %20
    %22 = vset.pattern.permute.xlu0 0
    %23 = vperm.xlu0 %22, %v16
    %v24 = vpop.permute.xlu0 %23
    %vm25 = vcmp.eq.s32.totalorder %v18, %v21
    %vm26 = vcmp.eq.s32.totalorder %v18, %v24
    %v27 = vsel %vm25, 1, 0
    %v28 = vsel %vm26, 1, 0
    %v29 = vcvt.s32.f32 %v27
    %v30 = vcvt.s32.f32 %v28
    %v31 = vld [vmem:[%s1] sm:$0xff]
    %v32 = vld [vmem:[%s1 + $0x8] sm:$0xff]
    %v33 = vld [vmem:[%s1 + $0x10] sm:$0xff]
    %v34 = vld [vmem:[%s1 + $0x18] sm:$0xff]
    %v35 = vld [vmem:[%s1 + $0x20] sm:$0xff]
    %v36 = vld [vmem:[%s1 + $0x28] sm:$0xff]
    %v37 = vld [vmem:[%s1 + $0x30] sm:$0xff]
    %v38 = vld [vmem:[%s1 + $0x38] sm:$0xff]
    %v39 = vld [vmem:[%s2] sm:$0xff]
    %vm40 = vcmask 523264
    %v42 = vsel %vm40, %v29, 0
    %v45 = vsel %vm40, %v30, 0
    %47 = vmatprep.subr.mxu0 0.0
    %48 = vmatpush1.msra.mxu0 %v31
    %49 = vmatprep.subr.mxu0 0.0
    %50 = vmatpush1.msra.mxu0 %v32
    %51 = vmatprep.subr.mxu0 0.0
    %52 = vmatpush1.msra.mxu0 %v33
    %53 = vmatprep.subr.mxu0 0.0
    %54 = vmatpush1.msra.mxu0 %v34
    %55 = vmatprep.subr.mxu0 0.0
    %56 = vmatpush1.msra.mxu0 %v35
    %57 = vmatprep.subr.mxu0 0.0
    %58 = vmatpush1.msra.mxu0 %v36
    %59 = vmatprep.subr.mxu0 0.0
    %60 = vmatpush1.msra.mxu0 %v37
    %61 = vmatprep.subr.mxu0 0.0
    %62 = vmatpush1.msra.mxu0 %v38
    %63 = vmatprep.subr.mxu0 0.0
    %64 = vmatpush1.msra.mxu0 0.0
    %65 = vmatprep.subr.mxu0 0.0
    %66 = vmatpush1.msra.mxu0 0.0
    %67 = vmatprep.subr.mxu0 0.0
    %68 = vmatpush1.msra.mxu0 0.0
    %69 = vmatprep.subr.mxu0 0.0
    %70 = vmatpush1.msra.mxu0 0.0
    %71 = vmatprep.subr.mxu0 0.0
    %72 = vmatpush1.msra.mxu0 0.0
    %73 = vmatprep.subr.mxu0 0.0
    %74 = vmatpush1.msra.mxu0 0.0
    %75 = vmatprep.subr.mxu0 0.0
    %76 = vmatpush1.msra.mxu0 0.0
    %77 = vmatprep.subr.mxu0 0.0
    %78 = vmatpush1.msra.mxu0 0.0
    %79 = vmatprep.subr.mxu0 0.0
    %80 = vmatpush1.msra.mxu0 0.0
    %81 = vmatprep.subr.mxu0 0.0
    %82 = vmatpush1.msra.mxu0 0.0
    %83 = vmatprep.subr.mxu0 0.0
    %84 = vmatpush1.msra.mxu0 0.0
    %85 = vmatprep.subr.mxu0 0.0
    %86 = vmatpush1.msra.mxu0 0.0
    %87 = vmatprep.subr.mxu0 0.0
    %88 = vmatpush1.msra.mxu0 0.0
    %89 = vmatprep.subr.mxu0 0.0
    %90 = vmatpush1.msra.mxu0 0.0
    %91 = vmatprep.subr.mxu0 0.0
    %92 = vmatpush1.msra.mxu0 0.0
    %93 = vmatprep.subr.mxu0 0.0
    %94 = vmatpush1.msra.mxu0 0.0
    %95 = vmatprep.subr.mxu0 0.0
    %96 = vmatpush1.msra.mxu0 0.0
    %97 = vmatprep.subr.mxu0 0.0
    %98 = vmatpush1.msra.mxu0 0.0
    %99 = vmatprep.subr.mxu0 0.0
    %100 = vmatpush1.msra.mxu0 0.0
    %101 = vmatprep.subr.mxu0 0.0
    %102 = vmatpush1.msra.mxu0 0.0
    %103 = vmatprep.subr.mxu0 0.0
    %104 = vmatpush1.msra.mxu0 0.0
    %105 = vmatprep.subr.mxu0 0.0
    %106 = vmatpush1.msra.mxu0 0.0
    %107 = vmatprep.subr.mxu0 0.0
    %108 = vmatpush1.msra.mxu0 0.0
    %109 = vmatprep.subr.mxu0 0.0
    %110 = vmatpush1.msra.mxu0 0.0
    %111 = vmatprep.mubr.f32.mxu0 0.0
    %112 = vmatmul.mubr.f32.gmra.mrb[0].mxu0 %v42
    %v113 = vpop.f32.mrb[0].mxu0
    %v114 = vadd.f32 %v39, %v113
    %v115 = vpop.f32.mrb[0].mxu0
    %116 = vmatprep.mubr.f32.mxu0 0.0
    %117 = vmatmul.mubr.f32.gmra.mrb[0].mxu0 %v45
    %v118 = vpop.f32.mrb[0].mxu0
    %v119 = vadd.f32 %v39, %v118
    %v120 = vpop.f32.mrb[0].mxu0
    %121 = vdwg.mxu0
    %vm122 = vcmask 261120
    %123 = vst.msk [vmem:[#allocation2] sm:$0xff] %vm122, %v114
    %124 = vst.msk [vmem:[#allocation2 + $0x8] sm:$0xff] %vm122, %v119
    // Predicated region
    $region14: #{tpu_custom_call.1} parent=1 // pred_check
      _
    $region15: #{tpu_custom_call.1} parent=1 // pred_check_branch
      %126 = sbr.rel (0) target = $region17
    $region16: #{tpu_custom_call.1} parent=1 // pred_region
      %s128 = ssub.s32 256, 256
      %129 = vsyncadd [#allocation3], %s128
      %s130 = sshll.u32 [#allocation2], 4
      %s131 = int_to_ptr.vmem [resolvable:$true] %s130
      %136 = dma.vmem_to_hbm [thread:$0]  %s131, 256, %s3, [#allocation3], 128, 128, 8
    $region17: #{tpu_custom_call.1} parent=1 // pred_fallthru
      _
    // Predicated region
    $region18: #{tpu_custom_call.1} parent=1 // pred_check
      _
    $region19: #{tpu_custom_call.1} parent=1 // pred_check_branch
      %138 = sbr.rel (0) target = $region21
    $region20: #{tpu_custom_call.1} parent=1 // pred_region
      %139 = dma.done [#allocation3], 256
    $region21: #{tpu_custom_call.1} parent=1 // pred_fallthru
      _
    %140 = vsyncpa [#allocation3], 1

</llo_original>
